<compile_context>
chip_gen: v5e
topology: v5e:2x2
jax: 0.10.0
libtpu: 0.0.40
codegen_flags: <defaults>
</compile_context>

<pallas_src>
import functools

import jax
import jax.numpy as jnp
from jax.experimental import pallas as pl
from jax.experimental.pallas import tpu as pltpu


def _round_up(x, m):
    return (x + m - 1) // m * m


def _decoder_kernel(z_ref, w1_ref, b1_ref, w2_ref, b2_ref, o_ref, *, use_sigmoid):
    # Layer 1: (TB, latent) @ (latent, H) on the MXU, f32 accumulation.
    h = jnp.dot(z_ref[...], w1_ref[...], preferred_element_type=jnp.float32)
    # Bias is a (1, H) tile; broadcasts over the TB rows. ReLU on the VPU (f32,
    # friendly to v5e's f32-only VPU).
    h = jnp.maximum(h + b1_ref[...], 0.0)

    # Layer 2: cast activations to the weight dtype (bf16) for the MXU,
    # accumulate in f32.
    out = jnp.dot(h.astype(w2_ref.dtype), w2_ref[...],
                  preferred_element_type=jnp.float32)
    out = out + b2_ref[...]

    if use_sigmoid:
        out = jax.nn.sigmoid(out)  # EUP, f32

    o_ref[...] = out.astype(o_ref.dtype)


def prepare_decoder_params(w1, b1, w2, b2, *, compute_dtype=jnp.bfloat16):
    """One-time parameter packing (do NOT call per forward step).

    w1: (latent, hidden)   (transposed vs. torch nn.Linear.weight)
    b1: (hidden,)
    w2: (hidden, output)
    b2: (output,)

    Returns (w1_p, b1_p, w2_p, b2_p) with the hidden dim zero-padded to a
    multiple of 128 lanes, weights cast to `compute_dtype`, biases kept f32
    as (1, N) row tiles.
    """
    latent, hidden = w1.shape
    output = w2.shape[1]
    H = _round_up(hidden, 128)

    w1_p = jnp.zeros((latent, H), compute_dtype).at[:, :hidden].set(
        w1.astype(compute_dtype))
    b1_p = jnp.zeros((1, H), jnp.float32).at[0, :hidden].set(
        b1.astype(jnp.float32))
    # Padded hidden rows of w2 are zero, so the zero padded-hidden activations
    # contribute nothing to the second matmul.
    w2_p = jnp.zeros((H, output), compute_dtype).at[:hidden, :].set(
        w2.astype(compute_dtype))
    b2_p = b2.reshape(1, output).astype(jnp.float32)
    return w1_p, b1_p, w2_p, b2_p


def decoder_forward(z, params, *, use_sigmoid=False, out_dtype=jnp.float32,
                    block_b=512):
    """Fused MLP decoder forward.

    z      : (B, latent) activations (any float dtype)
    params : output of prepare_decoder_params
    returns (B, output) in out_dtype
    """
    w1_p, b1_p, w2_p, b2_p = params
    B, latent = z.shape
    H = w1_p.shape[1]
    output = w2_p.shape[1]
    compute_dtype = w1_p.dtype

    # Batch padded only to 8 sublanes; tile sized so that (a) it is large
    # (default up to 512 rows) to amortize per-grid-step overhead on the
    # single-TC v5e/v6e, and (b) the grid has >= 2 steps whenever B exceeds
    # one tile, so both v7x TensorCores get work ("parallel" axis).
    B_pad = _round_up(B, 8)
    TB = max(8, min(block_b, _round_up(pl.cdiv(B_pad, 2), 8)))
    grid = (pl.cdiv(B_pad, TB),)

    z_c = z.astype(compute_dtype)
    if B_pad != B:
        z_c = jnp.zeros((B_pad, latent), compute_dtype).at[:B, :].set(z_c)

    kernel = functools.partial(_decoder_kernel, use_sigmoid=use_sigmoid)

    out = pl.pallas_call(
        kernel,
        out_shape=jax.ShapeDtypeStruct((B_pad, output), out_dtype),
        grid_spec=pltpu.PrefetchScalarGridSpec(
            num_scalar_prefetch=0,
            grid=grid,
            in_specs=[
                pl.BlockSpec((TB, latent), lambda i: (i, 0)),   # z tile
                pl.BlockSpec((latent, H), lambda i: (0, 0)),    # w1 (VMEM-resident)
                pl.BlockSpec((1, H), lambda i: (0, 0)),         # b1 (resident)
                pl.BlockSpec((H, output), lambda i: (0, 0)),    # w2 (resident)
                pl.BlockSpec((1, output), lambda i: (0, 0)),    # b2 (resident)
            ],
            # Full-array (unpadded) last dim -> no padded f32 columns written
            # back to HBM, no wrapper column slice.
            out_specs=pl.BlockSpec((TB, output), lambda i: (i, 0)),
        ),
        compiler_params=pltpu.CompilerParams(
            dimension_semantics=("parallel",)),
    )(z_c, w1_p, b1_p, w2_p, b2_p)

    if B_pad != B:
        out = out[:B]
    return out


def init_linear_params(key, in_features, out_features):
    """Deterministic init matching nn.Linear default (uniform +-1/sqrt(fan_in)).
    Weight is stored as (in_features, out_features) for the kernel layout."""
    kw, kb = jax.random.split(key)
    bound = 1.0 / jnp.sqrt(jnp.float32(in_features))
    w = jax.random.uniform(kw, (in_features, out_features), jnp.float32,
                           minval=-bound, maxval=bound)
    b = jax.random.uniform(kb, (out_features,), jnp.float32,
                           minval=-bound, maxval=bound)
    return w, b


if __name__ == "__main__":
    latent_dim = 10
    hidden_dim = 50
    output_dim = 64
    batch = 8
    use_sigmoid = False  # matches the module's default

    key = jax.random.PRNGKey(0)
    k_z, k_l1, k_l2 = jax.random.split(key, 3)

    z = jax.random.normal(k_z, (batch, latent_dim), jnp.float32)
    w1, b1 = init_linear_params(k_l1, latent_dim, hidden_dim)
    w2, b2 = init_linear_params(k_l2, hidden_dim, output_dim)

    # One-time parameter prep (hoisted out of the forward path).
    params = prepare_decoder_params(w1, b1, w2, b2)
    params = jax.block_until_ready(params)

    out = decoder_forward(z, params, use_sigmoid=use_sigmoid)
    out = jax.block_until_ready(out)

    # Pure-JAX reference mirroring the kernel's numerics (bf16 operands,
    # f32 accumulation, f32 elementwise epilogue).
    # TODO(synk): vs. a true f32 torch nn.Linear the bf16-operand error can
    # exceed 1e-3 for other shapes/seeds; use compute_dtype=float32 params if
    # exact f32 numerics are required.
    def bf16_round(x):
        return x.astype(jnp.bfloat16).astype(jnp.float32)

    hp = jax.lax.Precision.HIGHEST
    h_ref = jnp.maximum(
        jnp.dot(bf16_round(z), bf16_round(w1), precision=hp) + b1.reshape(1, -1),
        0.0)
    ref = jnp.dot(bf16_round(h_ref), bf16_round(w2), precision=hp) + b2.reshape(1, -1)
    if use_sigmoid:
        ref = jax.nn.sigmoid(ref)

    assert out.shape == (batch, output_dim), out.shape
    assert jnp.allclose(out, ref, atol=1e-3, rtol=1e-3), "mismatch vs reference"

    print("KERNEL_OK")
</pallas_src>

<mosaic_0001>
module attributes {stable_mosaic.version = 11 : i64} {
  func.func @_decoder_kernel(%arg0: i32, %arg1: memref<8x10xbf16, #tpu.memory_space<vmem>>, %arg2: memref<10x128xbf16, #tpu.memory_space<vmem>>, %arg3: memref<1x128xf32, #tpu.memory_space<vmem>>, %arg4: memref<128x64xbf16, #tpu.memory_space<vmem>>, %arg5: memref<1x64xf32, #tpu.memory_space<vmem>>, %arg6: memref<8x64xf32, #tpu.memory_space<vmem>>) attributes {dimension_semantics = [#tpu.dimension_semantics<parallel>], iteration_bounds = array<i64: 1>, scalar_prefetch = 0 : i64, scratch_operands = 0 : i64, tpu.core_type = #tpu.core_type<tc>, window_params = [{transform_indices = @transform_0, window_bounds = array<i64: 8, 10>}, {pipeline_mode = #tpu.pipeline_mode<synchronous>, transform_indices = @transform_1, window_bounds = array<i64: 10, 128>}, {pipeline_mode = #tpu.pipeline_mode<synchronous>, transform_indices = @transform_2, window_bounds = array<i64: 1, 128>}, {pipeline_mode = #tpu.pipeline_mode<synchronous>, transform_indices = @transform_3, window_bounds = array<i64: 128, 64>}, {pipeline_mode = #tpu.pipeline_mode<synchronous>, transform_indices = @transform_4, window_bounds = array<i64: 1, 64>}, {transform_indices = @transform_5, window_bounds = array<i64: 8, 64>}]} {
    %c0 = arith.constant 0 : index
    %c0_0 = arith.constant 0 : index
    %0 = vector.load %arg1[%c0, %c0_0] : memref<8x10xbf16, #tpu.memory_space<vmem>>, vector<8x10xbf16>
    %c0_1 = arith.constant 0 : index
    %c0_2 = arith.constant 0 : index
    %1 = vector.load %arg2[%c0_1, %c0_2] : memref<10x128xbf16, #tpu.memory_space<vmem>>, vector<10x128xbf16>
    %cst = arith.constant dense<0.000000e+00> : vector<8x128xf32>
    %2 = tpu.matmul %0, %1, %cst {dimension_numbers = #tpu.dot_dimension_numbers<[1], [0], [0], [1], [0, 0, 1, 1], [], []>} : vector<8x10xbf16>, vector<10x128xbf16>, vector<8x128xf32> -> vector<8x128xf32>
    %c0_3 = arith.constant 0 : index
    %c0_4 = arith.constant 0 : index
    %3 = vector.load %arg3[%c0_3, %c0_4] : memref<1x128xf32, #tpu.memory_space<vmem>>, vector<1x128xf32>
    %4 = vector.broadcast %3 : vector<1x128xf32> to vector<8x128xf32>
    %5 = arith.addf %2, %4 : vector<8x128xf32>
    %cst_5 = arith.constant 0.000000e+00 : f32
    %6 = vector.broadcast %cst_5 : f32 to vector<8x128xf32>
    %7 = arith.maximumf %5, %6 : vector<8x128xf32>
    %8 = arith.truncf %7 : vector<8x128xf32> to vector<8x128xbf16>
    %c0_6 = arith.constant 0 : index
    %c0_7 = arith.constant 0 : index
    %9 = vector.load %arg4[%c0_6, %c0_7] : memref<128x64xbf16, #tpu.memory_space<vmem>>, vector<128x64xbf16>
    %cst_8 = arith.constant dense<0.000000e+00> : vector<8x64xf32>
    %10 = tpu.matmul %8, %9, %cst_8 {dimension_numbers = #tpu.dot_dimension_numbers<[1], [0], [0], [1], [0, 0, 1, 1], [], []>} : vector<8x128xbf16>, vector<128x64xbf16>, vector<8x64xf32> -> vector<8x64xf32>
    %c0_9 = arith.constant 0 : index
    %c0_10 = arith.constant 0 : index
    %11 = vector.load %arg5[%c0_9, %c0_10] : memref<1x64xf32, #tpu.memory_space<vmem>>, vector<1x64xf32>
    %12 = vector.broadcast %11 : vector<1x64xf32> to vector<8x64xf32>
    %13 = arith.addf %10, %12 : vector<8x64xf32>
    %c0_11 = arith.constant 0 : index
    %c0_12 = arith.constant 0 : index
    %14 = vector.load %arg6[%c0_11, %c0_12] : memref<8x64xf32, #tpu.memory_space<vmem>>, vector<8x64xf32>
    tpu.vector_store %arg6[%c0_11, %c0_12], %13 {strides = array<i32>} : memref<8x64xf32, #tpu.memory_space<vmem>>, vector<8x64xf32>,
    return
  }
  func.func @transform_0(%arg0: i32) -> (i32, i32) {
    %c0_i32 = arith.constant 0 : i32
    %c0_i32_0 = arith.constant 0 : i32
    return %arg0, %c0_i32 : i32, i32
  }
  func.func @transform_1(%arg0: i32) -> (i32, i32) {
    %c0_i32 = arith.constant 0 : i32
    %c0_i32_0 = arith.constant 0 : i32
    %c0_i32_1 = arith.constant 0 : i32
    return %c0_i32, %c0_i32_0 : i32, i32
  }
  func.func @transform_2(%arg0: i32) -> (i32, i32) {
    %c0_i32 = arith.constant 0 : i32
    %c0_i32_0 = arith.constant 0 : i32
    %c0_i32_1 = arith.constant 0 : i32
    return %c0_i32, %c0_i32_0 : i32, i32
  }
  func.func @transform_3(%arg0: i32) -> (i32, i32) {
    %c0_i32 = arith.constant 0 : i32
    %c0_i32_0 = arith.constant 0 : i32
    %c0_i32_1 = arith.constant 0 : i32
    return %c0_i32, %c0_i32_0 : i32, i32
  }
  func.func @transform_4(%arg0: i32) -> (i32, i32) {
    %c0_i32 = arith.constant 0 : i32
    %c0_i32_0 = arith.constant 0 : i32
    %c0_i32_1 = arith.constant 0 : i32
    return %c0_i32, %c0_i32_0 : i32, i32
  }
  func.func @transform_5(%arg0: i32) -> (i32, i32) {
    %c0_i32 = arith.constant 0 : i32
    %c0_i32_0 = arith.constant 0 : i32
    return %arg0, %c0_i32 : i32, i32
  }
}

</mosaic_0001>

<llo_original>
// kernel: tpu_custom_call.1
$region0: #{tpu_custom_call.1}
  #allocation0 [shape = 'u32[]', space=smem, size = 0x4, offset = 0x4, fixed_abs, tag = 'smem constant byte address 0x4 - core index']
  #allocation1 [shape = 'u32[72,128]{1,0:T(1,128)}', space=vmem, size = 0x9000, scoped, tag = 'internal scratch']
  %s0 = inlined_call_operand.vmem [shape: bf16[8,10], index: 0, kind: input, shape index: {}]
  %s1 = inlined_call_operand.vmem [shape: bf16[10,128], index: 1, kind: input, shape index: {}]
  %s2 = inlined_call_operand.vmem [shape: f32[1,128], index: 2, kind: input, shape index: {}]
  %s3 = inlined_call_operand.vmem [shape: bf16[128,64], index: 3, kind: input, shape index: {}]
  %s4 = inlined_call_operand.vmem [shape: f32[1,64], index: 4, kind: input, shape index: {}]
  %s5 = inlined_call_operand.hbm [shape: f32[8,64], index: 5, kind: output, shape index: {}]
  %s6 = sld [smem:[#allocation0]]
  $region30: #{tpu_custom_call.1} parent=0
    _
  %s8 = ssub.s32 1, %s6
  %s9 = scalar_select 0, %s8, %s6
  $region1: #{tpu_custom_call.1} parent=0
    #allocation2 [shape = 'u8[4096]{0}', space=vmem, size = 0x1000, scoped, tag = 'output window, operand 0, single buffered']
    #allocation3 [shape = 's32[1]{0}', space=sflag, size = 0x4, scoped, tag = 'scoped memory for tpu_custom_call.1']
    %10 = vsyncpa [#allocation3], 0
    // Predicated region
    $region2: #{tpu_custom_call.1} parent=1 // pred_check
      _
    $region3: #{tpu_custom_call.1} parent=1 // pred_check_branch
      %12 = sbr.rel (0) target = $region5
    $region4: #{tpu_custom_call.1} parent=1 // pred_region
      _
    $region5: #{tpu_custom_call.1} parent=1 // pred_fallthru
      _
    // Predicated region
    $region6: #{tpu_custom_call.1} parent=1 // pred_check
      _
    $region7: #{tpu_custom_call.1} parent=1 // pred_check_branch
      %14 = sbr.rel (0) target = $region9
    $region8: #{tpu_custom_call.1} parent=1 // pred_region
      _
    $region9: #{tpu_custom_call.1} parent=1 // pred_fallthru
      _
    // Predicated region
    $region10: #{tpu_custom_call.1} parent=1 // pred_check
      _
    $region11: #{tpu_custom_call.1} parent=1 // pred_check_branch
      %16 = sbr.rel (0) target = $region13
    $region12: #{tpu_custom_call.1} parent=1 // pred_region
      _
    $region13: #{tpu_custom_call.1} parent=1 // pred_fallthru
      _
    // Predicated region
    $region14: #{tpu_custom_call.1} parent=1 // pred_check
      _
    $region15: #{tpu_custom_call.1} parent=1 // pred_check_branch
      %18 = sbr.rel (0) target = $region17
    $region16: #{tpu_custom_call.1} parent=1 // pred_region
      _
    $region17: #{tpu_custom_call.1} parent=1 // pred_fallthru
      _
    // Predicated region
    $region18: #{tpu_custom_call.1} parent=1 // pred_check
      _
    $region19: #{tpu_custom_call.1} parent=1 // pred_check_branch
      %20 = sbr.rel (0) target = $region21
    $region20: #{tpu_custom_call.1} parent=1 // pred_region
      _
    $region21: #{tpu_custom_call.1} parent=1 // pred_fallthru
      _
    %v22 = vld [vmem:[%s0] sm:$0xf]
    %v23 = vld [vmem:[%s1] sm:$0xf]
    %v24 = vld [vmem:[%s1 + $0x4] sm:$0x1]
    %v25 = vld [vmem:[%s2] sm:$0x1]
    %v27 = vperm.slane %v25, 0
    %v31 = vunpack.c.l.b16 %v23
    %v32 = vunpack.c.l.b16 %v24
    %v33 = vpack.c.b16 %v32, %v31
    %vm34 = vcmask 80896
    %v36 = vsel %vm34, %v22, 0
    %vm38 = vcmask 1044480
    %v40 = vsel %vm38, %v33, 0
    %42 = vmatpush.bf16.msra.mxu0 0
    %43 = vmatpush.bf16.msra.mxu0 0
    %44 = vmatpush.bf16.msra.mxu0 0
    %45 = vmatpush.bf16.msra.mxu0 0
    %46 = vmatpush.bf16.msra.mxu0 0
    %47 = vmatpush.bf16.msra.mxu0 0
    %48 = vmatpush.bf16.msra.mxu0 0
    %49 = vmatpush.bf16.msra.mxu0 %v40
    %50 = vmatmul.bf16.gmra.mxu0 %v36
    %v51 = vpop.f32.mrf.mxu0
    %v52 = vadd.f32 %v27, %v51
    %v53 = vpop.f32.mrf.mxu0
    %54 = vdwg.mxu0
    %v55 = vmax.f32 %v52, 0.0
    %v56 = vpack.c.bf16 %v55, %v55
    %v57 = vld [vmem:[%s3] sm:$0xf]
    %v58 = vld [vmem:[%s3 + $0x4] sm:$0xf]
    %v59 = vld [vmem:[%s3 + $0x8] sm:$0xf]
    %v60 = vld [vmem:[%s3 + $0xc] sm:$0xf]
    %v61 = vld [vmem:[%s3 + $0x10] sm:$0xf]
    %v62 = vld [vmem:[%s3 + $0x14] sm:$0xf]
    %v63 = vld [vmem:[%s3 + $0x18] sm:$0xf]
    %v64 = vld [vmem:[%s3 + $0x1c] sm:$0xf]
    %v65 = vld [vmem:[%s3 + $0x20] sm:$0xf]
    %v66 = vld [vmem:[%s3 + $0x24] sm:$0xf]
    %v67 = vld [vmem:[%s3 + $0x28] sm:$0xf]
    %v68 = vld [vmem:[%s3 + $0x2c] sm:$0xf]
    %v69 = vld [vmem:[%s3 + $0x30] sm:$0xf]
    %v70 = vld [vmem:[%s3 + $0x34] sm:$0xf]
    %v71 = vld [vmem:[%s3 + $0x38] sm:$0xf]
    %v72 = vld [vmem:[%s3 + $0x3c] sm:$0xf]
    %v73 = vld [vmem:[%s4] sm:$0x1]
    %v75 = vperm.slane %v73, 0
    %v93 = vunpack.c.l.b16 %v57
    %v94 = vunpack.c.l.b16 %v58
    %v95 = vunpack.c.l.b16 %v59
    %v96 = vunpack.c.l.b16 %v60
    %v97 = vunpack.c.l.b16 %v61
    %v98 = vunpack.c.l.b16 %v62
    %v99 = vunpack.c.l.b16 %v63
    %v100 = vunpack.c.l.b16 %v64
    %v101 = vunpack.c.l.b16 %v65
    %v102 = vunpack.c.l.b16 %v66
    %v103 = vunpack.c.l.b16 %v67
    %v104 = vunpack.c.l.b16 %v68
    %v105 = vunpack.c.l.b16 %v69
    %v106 = vunpack.c.l.b16 %v70
    %v107 = vunpack.c.l.b16 %v71
    %v108 = vunpack.c.l.b16 %v72
    %v109 = vpack.c.b16 %v94, %v93
    %v110 = vpack.c.b16 %v96, %v95
    %v111 = vpack.c.b16 %v98, %v97
    %v112 = vpack.c.b16 %v100, %v99
    %v113 = vpack.c.b16 %v102, %v101
    %v114 = vpack.c.b16 %v104, %v103
    %v115 = vpack.c.b16 %v106, %v105
    %v116 = vpack.c.b16 %v108, %v107
    %125 = vmatpush.bf16.msra.mxu0 %v116
    %126 = vmatpush.bf16.msra.mxu0 %v115
    %127 = vmatpush.bf16.msra.mxu0 %v114
    %128 = vmatpush.bf16.msra.mxu0 %v113
    %129 = vmatpush.bf16.msra.mxu0 %v112
    %130 = vmatpush.bf16.msra.mxu0 %v111
    %131 = vmatpush.bf16.msra.mxu0 %v110
    %132 = vmatpush.bf16.msra.mxu0 %v109
    %133 = vmatmul.bf16.gmra.mxu0 %v56
    %v134 = vpop.f32.mrf.mxu0
    %v135 = vadd.f32 %v75, %v134
    %v136 = vpop.f32.mrf.mxu0
    %137 = vdwg.mxu0
    %vm138 = vcmask 523264
    %139 = vst.msk [vmem:[#allocation2] sm:$0xff] %vm138, %v135
    // Predicated region
    $region22: #{tpu_custom_call.1} parent=1 // pred_check
      _
    $region23: #{tpu_custom_call.1} parent=1 // pred_check_branch
      %141 = sbr.rel (0) target = $region25
    $region24: #{tpu_custom_call.1} parent=1 // pred_region
      %143 = vsyncadd [#allocation3], 0
      %s145 = sshll.u32 [#allocation2], 4
      %s146 = int_to_ptr.vmem [resolvable:$true] %s145
      %s147 = sshll.u32 %s5, 4
      %s148 = int_to_ptr.hbm [resolvable:$true] %s147
      %150 = dma.vmem_to_hbm [thread:$0]  %s146, 128, %s148, [#allocation3]
    $region25: #{tpu_custom_call.1} parent=1 // pred_fallthru
      _
    // Predicated region
    $region26: #{tpu_custom_call.1} parent=1 // pred_check
      _
    $region27: #{tpu_custom_call.1} parent=1 // pred_check_branch
      %152 = sbr.rel (0) target = $region29
    $region28: #{tpu_custom_call.1} parent=1 // pred_region
      %154 = dma.done [#allocation3], 128
    $region29: #{tpu_custom_call.1} parent=1 // pred_fallthru
      _
    %155 = vsyncpa [#allocation3], 1

</llo_original>
